<compile_context>
chip_gen: v6e
topology: v6e:2x2x1
jax: 0.10.0
libtpu: 0.0.40
codegen_flags: <defaults>
</compile_context>

<pallas_src>
import math

import jax
import jax.numpy as jnp
from jax.experimental import pallas as pl
from jax.experimental.pallas import tpu as pltpu

_MIB = 1024 * 1024


def _round_down(x, m):
    return (x // m) * m


def _round_up(x, m):
    return -(-x // m) * m


def _cdiv(a, b):
    return -(-a // b)


def _vmem_capacity_bytes():
    """Physical per-core VMEM; conservative (v7x-sized) fallback."""
    try:
        cap = int(pltpu.get_tpu_info().vmem_capacity_bytes)
        if cap > 0:
            return cap
    except Exception:
        pass
    return 64 * _MIB


def _make_kernel_3d(ch_sizes):
    """Copy each (To, C_i, tt) input block into its channel slice."""
    n = len(ch_sizes)
    offs, o = [], 0
    for c in ch_sizes:
        offs.append(o)
        o += c

    def kernel(*refs):
        in_refs, out_ref = refs[:n], refs[n]
        for r, off, c in zip(in_refs, offs, ch_sizes):
            # TODO(synk): for sublane-misaligned offsets (off % pack != 0) a
            # direct HBM->HBM make_async_copy would skip the rotate/masked path.
            out_ref[:, off:off + c, :] = r[...].astype(out_ref.dtype)

    return kernel


def _make_kernel_2d(widths):
    """Copy each (To, C_i*trailing) input block into its flattened slice."""
    n = len(widths)
    starts, s = [], 0
    for w in widths:
        starts.append(s)
        s += w

    def kernel(*refs):
        in_refs, out_ref = refs[:n], refs[n]
        for r, st, w in zip(in_refs, starts, widths):
            out_ref[:, st:st + w] = r[...].astype(out_ref.dtype)

    return kernel


def concat(xs, dimension=1):
    """Pallas TPU equivalent of torch.cat(xs, dim=dimension)."""
    xs = list(xs)
    assert len(xs) >= 1
    if len(xs) == 1:
        return xs[0]

    ndim = xs[0].ndim
    d = dimension % ndim
    lead = xs[0].shape[:d]
    trail = xs[0].shape[d + 1:]
    for x in xs:
        assert x.ndim == ndim
        assert x.shape[:d] == lead and x.shape[d + 1:] == trail, (
            "all dims except the concat dim must match")

    out_dtype = jnp.result_type(*[x.dtype for x in xs])
    out_itemsize = jnp.dtype(out_dtype).itemsize
    in_itemsizes = [jnp.dtype(x.dtype).itemsize for x in xs]
    ch_sizes = [int(x.shape[d]) for x in xs]
    c_total = sum(ch_sizes)

    outer = int(math.prod(lead))
    trailing = int(math.prod(trail))

    vmem_cap = _vmem_capacity_bytes()
    # ~vmem/4 working-set budget: 16 MiB on v7x, 32 MiB on v5e/v6e.
    budget = min(max(vmem_cap // 4, 8 * _MIB), 48 * _MIB)

    out_bytes = outer * c_total * trailing * out_itemsize
    in_bytes = sum(int(x.size) * s for x, s in zip(xs, in_itemsizes))
    cost = pl.CostEstimate(flops=0, transcendentals=0,
                           bytes_accessed=in_bytes + out_bytes)

    # ---- choose layout -----------------------------------------------------
    use_2d = False
    To = 1
    if trailing < 128:
        # Small trailing dim: flatten (C_i, trailing) onto the lane axis so
        # stores are lane-dense instead of lane-masked.
        per_row = max(1, 4 * c_total * trailing * out_itemsize)
        to_cand = max(1, budget // per_row)
        if to_cand >= outer:
            To, use_2d = outer, True
        elif to_cand >= 8:
            To, use_2d = _round_down(to_cand, 8), True
        # else: rows too large for a legal (>=8-sublane) tile -> 3-D fallback.

    if use_2d:
        widths = [c * trailing for c in ch_sizes]
        row_elems = c_total * trailing
        # Give both v7x TensorCores work when there is enough of it.
        if _cdiv(outer, To) == 1 and outer > 8 and out_bytes >= _MIB:
            half = _round_up(_cdiv(outer, 2), 8)
            if half < outer:
                To = half
        grid = (_cdiv(outer, To),)
        operands = [x.reshape(outer, w) for x, w in zip(xs, widths)]
        in_specs = [pl.BlockSpec((To, w), lambda b: (b, 0)) for w in widths]
        out_specs = pl.BlockSpec((To, row_elems), lambda b: (b, 0))
        out_shape = jax.ShapeDtypeStruct((outer, row_elems), out_dtype)
        kernel = _make_kernel_2d(widths)
        dims = ("parallel",)
        per_step = (2 * sum(To * w * s for w, s in zip(widths, in_itemsizes))
                    + 2 * To * row_elems * out_itemsize)
    else:
        # 3-D path: trailing on the lane axis, channels on sublanes.
        per_col = max(1, 4 * c_total * out_itemsize)       # bytes / trailing elem
        min_tt = _round_up(max(128, _cdiv(2048, out_itemsize)), 128)  # >=2KiB DMA
        tt_cap = budget // per_col
        if trailing <= tt_cap:
            tt = trailing
        else:
            tt = min(trailing, max(min_tt, _round_down(tt_cap, 128)))
        To = min(outer, max(1, budget // max(1, per_col * tt)))
        if (_cdiv(outer, To) * _cdiv(trailing, tt) == 1) and out_bytes >= _MIB:
            if outer >= 2:
                To = _cdiv(outer, 2)
            elif trailing >= 256:
                tt = _round_up(_cdiv(trailing, 2), 128)
        grid = (_cdiv(outer, To), _cdiv(trailing, tt))
        operands = [x.reshape(outer, c, trailing) for x, c in zip(xs, ch_sizes)]
        in_specs = [pl.BlockSpec((To, c, tt), lambda b, t: (b, 0, t))
                    for c in ch_sizes]
        out_specs = pl.BlockSpec((To, c_total, tt), lambda b, t: (b, 0, t))
        out_shape = jax.ShapeDtypeStruct((outer, c_total, trailing), out_dtype)
        kernel = _make_kernel_3d(ch_sizes)
        dims = ("parallel", "parallel")
        per_step = (2 * sum(To * c * tt * s
                            for c, s in zip(ch_sizes, in_itemsizes))
                    + 2 * To * c_total * tt * out_itemsize)

    # Scoped VMEM limit that actually covers the (double-buffered) working set.
    vmem_limit = int(min(max(per_step + 8 * _MIB, 32 * _MIB),
                         max(vmem_cap - 4 * _MIB, 32 * _MIB)))

    out = pl.pallas_call(
        kernel,
        out_shape=out_shape,
        grid=grid,
        in_specs=in_specs,
        out_specs=out_specs,
        compiler_params=pltpu.CompilerParams(
            dimension_semantics=dims,
            vmem_limit_bytes=vmem_limit),
        cost_estimate=cost,
    )(*operands)

    return out.reshape(lead + (c_total,) + trail)


if __name__ == "__main__":
    key = jax.random.PRNGKey(0)
    k0, k1, k2, k3, k4 = jax.random.split(key, 5)

    # 1) NCHW feature maps, concat on channel dim (module default dim=1):
    #    exercises the 3-D lane-dense path.
    N, H, W = 2, 16, 16
    x0 = jax.random.normal(k0, (N, 4, H, W), dtype=jnp.float32)
    x1 = jax.random.normal(k1, (N, 6, H, W), dtype=jnp.float32)
    x2 = jax.random.normal(k2, (N, 8, H, W), dtype=jnp.float32)
    xs = [x0, x1, x2]

    y = concat(xs, dimension=1)
    y = jax.block_until_ready(y)
    ref = jnp.concatenate(xs, axis=1)
    assert y.shape == (N, 4 + 6 + 8, H, W)
    assert y.dtype == ref.dtype
    assert bool(jnp.array_equal(y, ref)), "mismatch vs jnp.concatenate (dim=1)"

    # 2) Concat on the last dim (trailing == 1): exercises the flattened 2-D path.
    a = jax.random.normal(k3, (2, 8, 4), dtype=jnp.float32)
    b = jax.random.normal(k4, (2, 8, 6), dtype=jnp.float32)
    y2 = concat([a, b], dimension=-1)
    y2 = jax.block_until_ready(y2)
    ref2 = jnp.concatenate([a, b], axis=-1)
    assert y2.shape == (2, 8, 10)
    assert bool(jnp.array_equal(y2, ref2)), "mismatch vs jnp.concatenate (dim=-1)"

    print("KERNEL_OK")
</pallas_src>

<mosaic_0001>
module attributes {stable_mosaic.version = 11 : i64} {
  func.func @kernel(%arg0: i32, %arg1: i32, %arg2: memref<2x4x256xf32, #tpu.memory_space<vmem>>, %arg3: memref<2x6x256xf32, #tpu.memory_space<vmem>>, %arg4: memref<2x8x256xf32, #tpu.memory_space<vmem>>, %arg5: memref<2x18x256xf32, #tpu.memory_space<vmem>>) attributes {dimension_semantics = [#tpu.dimension_semantics<parallel>, #tpu.dimension_semantics<parallel>], iteration_bounds = array<i64: 1, 1>, scalar_prefetch = 0 : i64, scratch_operands = 0 : i64, tpu.core_type = #tpu.core_type<tc>, window_params = [{transform_indices = @transform_0, window_bounds = array<i64: 2, 4, 256>}, {transform_indices = @transform_1, window_bounds = array<i64: 2, 6, 256>}, {transform_indices = @transform_2, window_bounds = array<i64: 2, 8, 256>}, {transform_indices = @transform_3, window_bounds = array<i64: 2, 18, 256>}]} {
    %c0 = arith.constant 0 : index
    %c0_0 = arith.constant 0 : index
    %c0_1 = arith.constant 0 : index
    %0 = vector.load %arg2[%c0, %c0_0, %c0_1] : memref<2x4x256xf32, #tpu.memory_space<vmem>>, vector<2x4x256xf32>
    %c0_2 = arith.constant 0 : index
    %c0_3 = arith.constant 0 : index
    %c0_4 = arith.constant 0 : index
    %1 = vector.load %arg5[%c0_2, %c0_3, %c0_4] : memref<2x18x256xf32, #tpu.memory_space<vmem>>, vector<2x4x256xf32>
    tpu.vector_store %arg5[%c0_2, %c0_3, %c0_4], %0 {strides = array<i32>} : memref<2x18x256xf32, #tpu.memory_space<vmem>>, vector<2x4x256xf32>,
    %c0_5 = arith.constant 0 : index
    %c0_6 = arith.constant 0 : index
    %c0_7 = arith.constant 0 : index
    %2 = vector.load %arg3[%c0_5, %c0_6, %c0_7] : memref<2x6x256xf32, #tpu.memory_space<vmem>>, vector<2x6x256xf32>
    %c0_8 = arith.constant 0 : index
    %c4 = arith.constant 4 : index
    %c0_9 = arith.constant 0 : index
    %3 = vector.load %arg5[%c0_8, %c4, %c0_9] : memref<2x18x256xf32, #tpu.memory_space<vmem>>, vector<2x6x256xf32>
    tpu.vector_store %arg5[%c0_8, %c4, %c0_9], %2 {strides = array<i32>} : memref<2x18x256xf32, #tpu.memory_space<vmem>>, vector<2x6x256xf32>,
    %c0_10 = arith.constant 0 : index
    %c0_11 = arith.constant 0 : index
    %c0_12 = arith.constant 0 : index
    %4 = vector.load %arg4[%c0_10, %c0_11, %c0_12] : memref<2x8x256xf32, #tpu.memory_space<vmem>>, vector<2x8x256xf32>
    %c0_13 = arith.constant 0 : index
    %c10 = arith.constant 10 : index
    %c0_14 = arith.constant 0 : index
    %5 = vector.load %arg5[%c0_13, %c10, %c0_14] : memref<2x18x256xf32, #tpu.memory_space<vmem>>, vector<2x8x256xf32>
    tpu.vector_store %arg5[%c0_13, %c10, %c0_14], %4 {strides = array<i32>} : memref<2x18x256xf32, #tpu.memory_space<vmem>>, vector<2x8x256xf32>,
    return
  }
  func.func @transform_0(%arg0: i32, %arg1: i32) -> (i32, i32, i32) {
    %c0_i32 = arith.constant 0 : i32
    %c0_i32_0 = arith.constant 0 : i32
    return %arg0, %c0_i32, %arg1 : i32, i32, i32
  }
  func.func @transform_1(%arg0: i32, %arg1: i32) -> (i32, i32, i32) {
    %c0_i32 = arith.constant 0 : i32
    %c0_i32_0 = arith.constant 0 : i32
    return %arg0, %c0_i32, %arg1 : i32, i32, i32
  }
  func.func @transform_2(%arg0: i32, %arg1: i32) -> (i32, i32, i32) {
    %c0_i32 = arith.constant 0 : i32
    %c0_i32_0 = arith.constant 0 : i32
    return %arg0, %c0_i32, %arg1 : i32, i32, i32
  }
  func.func @transform_3(%arg0: i32, %arg1: i32) -> (i32, i32, i32) {
    %c0_i32 = arith.constant 0 : i32
    %c0_i32_0 = arith.constant 0 : i32
    return %arg0, %c0_i32, %arg1 : i32, i32, i32
  }
}

</mosaic_0001>

<llo_original>
// kernel: tpu_custom_call.1
$region0: #{tpu_custom_call.1}
  #allocation0 [shape = 'u32[]', space=smem, size = 0x4, offset = 0x4, fixed_abs, tag = 'smem constant byte address 0x4 - core index']
  #allocation1 [shape = 'u32[144,128]{1,0:T(1,128)}', space=vmem, size = 0x12000, scoped, tag = 'internal scratch']
  %s0 = inlined_call_operand.vmem [shape: f32[2,4,256], index: 0, kind: input, shape index: {}]
  %s1 = inlined_call_operand.vmem [shape: f32[2,6,256], index: 1, kind: input, shape index: {}]
  %s2 = inlined_call_operand.vmem [shape: f32[2,8,256], index: 2, kind: input, shape index: {}]
  %s3 = inlined_call_operand.vmem [shape: f32[2,18,256], index: 3, kind: output, shape index: {}]
  %s4 = sld [smem:[#allocation0]]
  $region22: #{tpu_custom_call.1} parent=0
    _
  %s6 = ssub.s32 1, %s4
  %s7 = scalar_select 0, %s6, %s4
  // Predicated region
  $region2: #{tpu_custom_call.1} parent=0 // pred_check
    _
  $region3: #{tpu_custom_call.1} parent=0 // pred_check_branch
    %9 = sbr.rel (0) target = $region5
  $region4: #{tpu_custom_call.1} parent=0 // pred_region
    _
  $region5: #{tpu_custom_call.1} parent=0 // pred_fallthru
    _
  // Predicated region
  $region6: #{tpu_custom_call.1} parent=0 // pred_check
    _
  $region7: #{tpu_custom_call.1} parent=0 // pred_check_branch
    %11 = sbr.rel (0) target = $region9
  $region8: #{tpu_custom_call.1} parent=0 // pred_region
    _
  $region9: #{tpu_custom_call.1} parent=0 // pred_fallthru
    _
  // Predicated region
  $region10: #{tpu_custom_call.1} parent=0 // pred_check
    _
  $region11: #{tpu_custom_call.1} parent=0 // pred_check_branch
    %13 = sbr.rel (0) target = $region13
  $region12: #{tpu_custom_call.1} parent=0 // pred_region
    _
  $region13: #{tpu_custom_call.1} parent=0 // pred_fallthru
    _
  %v14 = vld [vmem:[%s0] sm:$0xff]
  %v15 = vld [vmem:[%s0 + $0x8] sm:$0xff]
  %v18 = vcombine.high %v14, %v14
  %v19 = vcombine.high %v15, %v15
  %22 = vst [vmem:[%s3] sm:$0xf] %v14
  %23 = vst [vmem:[%s3 + $0x8] sm:$0xf] %v18
  %24 = vst [vmem:[%s3 + $0x30] sm:$0xf] %v15
  %25 = vst [vmem:[%s3 + $0x38] sm:$0xf] %v19
  %v26 = vld [vmem:[%s1] sm:$0x3f]
  %v27 = vld [vmem:[%s1 + $0x8] sm:$0x3f]
  %v28 = vld [vmem:[%s1 + $0x10] sm:$0x3f]
  %v29 = vld [vmem:[%s1 + $0x18] sm:$0x3f]
  %v34 = vrot.slane %v26, 4
  %v35 = vrot.slane %v27, 4
  %v36 = vrot.slane %v28, 4
  %v37 = vrot.slane %v29, 4
  %42 = vst [vmem:[%s3] sm:$0xf0] %v34
  %43 = vst [vmem:[%s3 + $0x8] sm:$0xf0] %v35
  %44 = vst [vmem:[%s3 + $0x10] sm:$0x3] %v34
  %45 = vst [vmem:[%s3 + $0x18] sm:$0x3] %v35
  %46 = vst [vmem:[%s3 + $0x30] sm:$0xf0] %v36
  %47 = vst [vmem:[%s3 + $0x38] sm:$0xf0] %v37
  %48 = vst [vmem:[%s3 + $0x40] sm:$0x3] %v36
  %49 = vst [vmem:[%s3 + $0x48] sm:$0x3] %v37
  %v50 = vld [vmem:[%s2] sm:$0xff]
  %v51 = vld [vmem:[%s2 + $0x8] sm:$0xff]
  %v52 = vld [vmem:[%s2 + $0x10] sm:$0xff]
  %v53 = vld [vmem:[%s2 + $0x18] sm:$0xff]
  %v58 = vrot.slane %v50, 6
  %v59 = vrot.slane %v51, 6
  %v60 = vrot.slane %v52, 6
  %v61 = vrot.slane %v53, 6
  %66 = vst [vmem:[%s3 + $0x10] sm:$0xfc] %v58
  %67 = vst [vmem:[%s3 + $0x18] sm:$0xfc] %v59
  %68 = vst [vmem:[%s3 + $0x20] sm:$0x3] %v58
  %69 = vst [vmem:[%s3 + $0x28] sm:$0x3] %v59
  %70 = vst [vmem:[%s3 + $0x40] sm:$0xfc] %v60
  %71 = vst [vmem:[%s3 + $0x48] sm:$0xfc] %v61
  %72 = vst [vmem:[%s3 + $0x50] sm:$0x3] %v60
  %73 = vst [vmem:[%s3 + $0x58] sm:$0x3] %v61
  // Predicated region
  $region14: #{tpu_custom_call.1} parent=0 // pred_check
    _
  $region15: #{tpu_custom_call.1} parent=0 // pred_check_branch
    %75 = sbr.rel (0) target = $region17
  $region16: #{tpu_custom_call.1} parent=0 // pred_region
    _
  $region17: #{tpu_custom_call.1} parent=0 // pred_fallthru
    _
  // Predicated region
  $region18: #{tpu_custom_call.1} parent=0 // pred_check
    _
  $region19: #{tpu_custom_call.1} parent=0 // pred_check_branch
    %77 = sbr.rel (0) target = $region21
  $region20: #{tpu_custom_call.1} parent=0 // pred_region
    _
  $region21: #{tpu_custom_call.1} parent=0 // pred_fallthru
    _

</llo_original>
